<compile_context>
chip_gen: v5e
topology: v5e:2x2
jax: 0.10.0
libtpu: 0.0.40
codegen_flags: <defaults>
</compile_context>

<pallas_src>
import functools

import jax
import jax.numpy as jnp
from jax.experimental import pallas as pl
from jax.experimental.pallas import tpu as pltpu


def gcn_layer_kernel(adj_t_ref, w_ref, x_ref, o_ref, *, mm_dtype):
    """One grid step = TB batch elements, in the native [B, D, N] layout.

    adj_t_ref: (N, N)        normalized adjacency, transposed (adj_norm^T), f32
    w_ref:     (Dout, Din)   nn.Linear weight (PyTorch storage layout, no transpose)
    x_ref:     (TB, Din, N)  block of node features
    o_ref:     (TB, Dout, N)
    """
    f32 = jnp.float32
    tb, d_in, n = x_ref.shape
    d_out = w_ref.shape[0]

    x = x_ref[...].astype(f32)                 # elementwise work stays f32
    w = w_ref[...].astype(mm_dtype)
    adj_t = adj_t_ref[...].astype(mm_dtype)

    # Linear: h[b] = W @ x[b]  == (x_bnd[b] @ W^T)^T.  TB is small & static -> unrolled.
    h = [
        jnp.dot(w, x[b].astype(mm_dtype), preferred_element_type=f32)
        for b in range(tb)
    ]
    h2d = jnp.concatenate(h, axis=0) if tb > 1 else h[0]          # (TB*Dout, N)

    # Propagate: out[b] = adj_n @ h_bnd[b]  ==  h[b] @ adj_n^T.  Collapsed over the batch
    # block so the MXU sees one (TB*Dout, N) x (N, N) tile instead of TB tiny matmuls.
    out2d = jnp.dot(h2d.astype(mm_dtype), adj_t, preferred_element_type=f32)
    out = out2d.reshape(tb, d_out, n)

    # Residual (input_dim == output_dim -> nn.Identity) + ReLU, in f32.
    # TODO(synk): the input_dim != output_dim residual branch applies nn.Linear to a
    # size-1 trailing axis in the reference and cannot run as written; not modeled.
    # TODO(synk): nn.Dropout(p=0.15) modeled in eval mode (identity), not stochastic.
    out = jnp.maximum(out + x, 0.0)
    o_ref[...] = out.astype(o_ref.dtype)


def _choose_block_b(batch, d_out):
    """Batch elements per grid step: aim for >=256 MXU rows (TB*D_out), keep >=2 grid
    steps when B >= 2 (megacore on v7x), and divide the batch exactly (no padding)."""
    target = max(1, -(-256 // max(d_out, 1)))        # ceil(256 / d_out)
    if batch >= 2:
        target = min(target, -(-batch // 2))         # keep at least 2 grid steps
    target = max(1, min(target, batch))
    tb = 1
    for cand in range(1, target + 1):
        if batch % cand == 0:
            tb = cand
    return tb


@functools.partial(jax.jit, static_argnames=("use_bf16_matmul",))
def gcn_layer(x, edge_index, w, use_bf16_matmul=False):
    """x: [B, D_in, N, 1], edge_index: [N, N], w: [D_out, D_in] -> [B, D_out, N, 1]."""
    B, d_in, N, _ = x.shape
    d_out = w.shape[0]

    # Batch-invariant adjacency normalization, hoisted out of the kernel (one-time,
    # O(N^2) broadcast scaling instead of two diagonal matmuls).  The kernel consumes
    # adj_norm^T because it works in the native [B, D, N] layout.
    a = edge_index.astype(jnp.float32) + jnp.eye(N, dtype=jnp.float32)
    d_inv_sqrt = jnp.sum(a, axis=1) ** -0.5          # deg >= 1 thanks to self-loops
    adj_norm_t = (d_inv_sqrt[:, None] * a * d_inv_sqrt[None, :]).T

    x_bdn = x[..., 0].astype(jnp.float32)            # [B, D_in, N]; trailing-1 squeeze is free

    tb = _choose_block_b(B, d_out)
    mm_dtype = jnp.bfloat16 if use_bf16_matmul else jnp.float32
    kernel = functools.partial(gcn_layer_kernel, mm_dtype=mm_dtype)

    out_bdn = pl.pallas_call(
        kernel,
        out_shape=jax.ShapeDtypeStruct((B, d_out, N), jnp.float32),
        grid=(B // tb,),
        in_specs=[
            pl.BlockSpec((N, N), lambda i: (0, 0)),            # adj_norm^T (grid-invariant)
            pl.BlockSpec((d_out, d_in), lambda i: (0, 0)),     # weight     (grid-invariant)
            pl.BlockSpec((tb, d_in, N), lambda i: (i, 0, 0)),  # per-block features
        ],
        out_specs=pl.BlockSpec((tb, d_out, N), lambda i: (i, 0, 0)),
        compiler_params=pltpu.CompilerParams(dimension_semantics=("parallel",)),
    )(adj_norm_t, w.astype(jnp.float32), x_bdn)

    return out_bdn[..., None]                        # [B, D_out, N, 1]; unsqueeze is free


def gcn_layer_ref(x, edge_index, w):
    """Pure-JAX reference mirroring the PyTorch forward (eval mode)."""
    _, _, N, _ = x.shape
    a = edge_index.astype(jnp.float32) + jnp.eye(N, dtype=jnp.float32)
    d = jnp.diag(jnp.power(a.sum(axis=1), -0.5))
    adj_n = d @ a @ d
    x2 = jnp.transpose(x[..., 0], (0, 2, 1)).astype(jnp.float32)     # [B, N, D]
    out = jnp.einsum("nm,bmd->bnd", adj_n, x2 @ w.T)
    out = jnp.maximum(out + x2, 0.0)
    return jnp.transpose(out, (0, 2, 1))[..., None]


if __name__ == "__main__":
    B, D, N = 2, 32, 16   # input_dim == output_dim == D (residual is Identity)

    key = jax.random.PRNGKey(0)
    kx, ka, kw = jax.random.split(key, 3)

    x = jax.random.normal(kx, (B, D, N, 1), dtype=jnp.float32)
    # random 0/1 adjacency (self-loops are added inside, like the torch code)
    edge_index = (jax.random.uniform(ka, (N, N)) < 0.3).astype(jnp.float32)
    # nn.Linear(D, D, bias=False).weight ~ U(-1/sqrt(D), 1/sqrt(D)), shape (D_out, D_in)
    bound = 1.0 / (D ** 0.5)
    w = jax.random.uniform(kw, (D, D), minval=-bound, maxval=bound, dtype=jnp.float32)

    ref = gcn_layer_ref(x, edge_index, w)

    out = jax.block_until_ready(gcn_layer(x, edge_index, w))
    assert out.shape == (B, D, N, 1), out.shape
    assert jnp.allclose(out, ref, atol=1e-4, rtol=1e-4), "f32 kernel mismatch vs reference"

    # Optional bf16-MXU path (v6e/v7x throughput option); accumulation stays f32.
    out_bf16 = jax.block_until_ready(gcn_layer(x, edge_index, w, use_bf16_matmul=True))
    assert jnp.allclose(out_bf16, ref, atol=5e-2, rtol=5e-2), "bf16 kernel mismatch"

    print("KERNEL_OK")
</pallas_src>

<mosaic_0001>
module attributes {stable_mosaic.version = 11 : i64} {
  func.func @gcn_layer_kernel(%arg0: i32, %arg1: memref<16x16xf32, #tpu.memory_space<vmem>>, %arg2: memref<32x32xf32, #tpu.memory_space<vmem>>, %arg3: memref<1x32x16xf32, #tpu.memory_space<vmem>>, %arg4: memref<1x32x16xf32, #tpu.memory_space<vmem>>) attributes {dimension_semantics = [#tpu.dimension_semantics<parallel>], iteration_bounds = array<i64: 2>, scalar_prefetch = 0 : i64, scratch_operands = 0 : i64, tpu.core_type = #tpu.core_type<tc>, window_params = [{pipeline_mode = #tpu.pipeline_mode<synchronous>, transform_indices = @transform_0, window_bounds = array<i64: 16, 16>}, {pipeline_mode = #tpu.pipeline_mode<synchronous>, transform_indices = @transform_1, window_bounds = array<i64: 32, 32>}, {transform_indices = @transform_2, window_bounds = array<i64: 1, 32, 16>}, {transform_indices = @transform_3, window_bounds = array<i64: 1, 32, 16>}]} {
    %c0 = arith.constant 0 : index
    %c0_0 = arith.constant 0 : index
    %c0_1 = arith.constant 0 : index
    %0 = vector.load %arg3[%c0, %c0_0, %c0_1] : memref<1x32x16xf32, #tpu.memory_space<vmem>>, vector<1x32x16xf32>
    %c0_2 = arith.constant 0 : index
    %c0_3 = arith.constant 0 : index
    %1 = vector.load %arg2[%c0_2, %c0_3] : memref<32x32xf32, #tpu.memory_space<vmem>>, vector<32x32xf32>
    %c0_4 = arith.constant 0 : index
    %c0_5 = arith.constant 0 : index
    %2 = vector.load %arg1[%c0_4, %c0_5] : memref<16x16xf32, #tpu.memory_space<vmem>>, vector<16x16xf32>
    %3 = vector.shape_cast %0 : vector<1x32x16xf32> to vector<32x16xf32>
    %cst = arith.constant dense<0.000000e+00> : vector<32x16xf32>
    %4 = tpu.matmul %1, %3, %cst {dimension_numbers = #tpu.dot_dimension_numbers<[1], [0], [0], [1], [0, 0, 1, 1], [], []>} : vector<32x32xf32>, vector<32x16xf32>, vector<32x16xf32> -> vector<32x16xf32>
    %cst_6 = arith.constant dense<0.000000e+00> : vector<32x16xf32>
    %5 = tpu.matmul %4, %2, %cst_6 {dimension_numbers = #tpu.dot_dimension_numbers<[1], [0], [0], [1], [0, 0, 1, 1], [], []>} : vector<32x16xf32>, vector<16x16xf32>, vector<32x16xf32> -> vector<32x16xf32>
    %6 = vector.shape_cast %5 : vector<32x16xf32> to vector<1x32x16xf32>
    %7 = arith.addf %6, %0 : vector<1x32x16xf32>
    %cst_7 = arith.constant 0.000000e+00 : f32
    %8 = vector.broadcast %cst_7 : f32 to vector<1x32x16xf32>
    %9 = arith.maximumf %7, %8 : vector<1x32x16xf32>
    %c0_8 = arith.constant 0 : index
    %c0_9 = arith.constant 0 : index
    %c0_10 = arith.constant 0 : index
    %10 = vector.load %arg4[%c0_8, %c0_9, %c0_10] : memref<1x32x16xf32, #tpu.memory_space<vmem>>, vector<1x32x16xf32>
    tpu.vector_store %arg4[%c0_8, %c0_9, %c0_10], %9 {strides = array<i32>} : memref<1x32x16xf32, #tpu.memory_space<vmem>>, vector<1x32x16xf32>,
    return
  }
  func.func @transform_0(%arg0: i32) -> (i32, i32) {
    %c0_i32 = arith.constant 0 : i32
    %c0_i32_0 = arith.constant 0 : i32
    %c0_i32_1 = arith.constant 0 : i32
    return %c0_i32, %c0_i32_0 : i32, i32
  }
  func.func @transform_1(%arg0: i32) -> (i32, i32) {
    %c0_i32 = arith.constant 0 : i32
    %c0_i32_0 = arith.constant 0 : i32
    %c0_i32_1 = arith.constant 0 : i32
    return %c0_i32, %c0_i32_0 : i32, i32
  }
  func.func @transform_2(%arg0: i32) -> (i32, i32, i32) {
    %c0_i32 = arith.constant 0 : i32
    %c0_i32_0 = arith.constant 0 : i32
    %c0_i32_1 = arith.constant 0 : i32
    return %arg0, %c0_i32, %c0_i32_0 : i32, i32, i32
  }
  func.func @transform_3(%arg0: i32) -> (i32, i32, i32) {
    %c0_i32 = arith.constant 0 : i32
    %c0_i32_0 = arith.constant 0 : i32
    %c0_i32_1 = arith.constant 0 : i32
    return %arg0, %c0_i32, %c0_i32_0 : i32, i32, i32
  }
}

</mosaic_0001>

<llo_original>
// kernel: gcn_layer.1
$region0: #{gcn_layer.1}
  #allocation0 [shape = 'u32[]', space=smem, size = 0x4, offset = 0x4, fixed_abs, tag = 'smem constant byte address 0x4 - core index']
  #allocation1 [shape = 'u32[72,128]{1,0:T(1,128)}', space=vmem, size = 0x9000, scoped, tag = 'internal scratch']
  %s0 = inlined_call_operand.vmem [shape: f32[16,16], index: 0, kind: input, shape index: {}]
  %s1 = inlined_call_operand.vmem [shape: f32[32,32], index: 1, kind: input, shape index: {}]
  %s2 = inlined_call_operand.vmem [shape: f32[2,32,16], index: 2, kind: input, shape index: {}]
  %s3 = inlined_call_operand.vmem [shape: f32[2,32,16], index: 3, kind: output, shape index: {}]
  %s4 = sld [smem:[#allocation0]]
  $region45: #{gcn_layer.1} parent=0
    _
  %s6 = ssub.s32 1, %s4
  %s7 = scalar_select 0, %s6, %s4
  loop: start=0, step=1, limit=4
  $region2: #{gcn_layer.1} parent=0 // loop_pre_header
    _
  $region3: #{gcn_layer.1} parent=0 // loop_header
    %s9 = sphi 0, %s13
    %p10 = scmp.ge.s32.totalorder %s9, 4
    %s17 = sphi 0, %s17
    %s19 = sphi 0, %s17
    %s20 = sphi 0, %s19
    %s34 = sphi 0, %s20
    %s38 = sphi 0, %s38
    %s40 = sphi 0, %s38
    %s41 = sphi 0, %s40
    %s55 = sphi 0, %s41
    %s61 = sphi 0, %s63
    %s64 = sphi 0, %s61
    %s65 = sphi 0, %s64
    %s81 = sphi 0, %s65
    %s87 = sphi 0, %s89
    %s90 = sphi 0, %s87
    %s91 = sphi 0, %s90
    %s107 = sphi 0, %s91
  $region4: #{gcn_layer.1} parent=0 // loop_header_branch
    %12 = sbr.rel (%p10) target = $region8
  $region5: #{gcn_layer.1} parent=0 // loop_body
    %s14 = ssub.s32 %s9, 1
    %s15 = ssub.s32 %s9, 2
    %s16 = sadd.s32 %s9, 1
    %s18 = sadd.s32 %s17, 1
    %p21 = scmp.eq.s32.totalorder %s9, 1
    %p22 = scmp.ne.s32.totalorder %s17, %s19
    %p23 = scmp.eq.s32.totalorder %s9, 0
    %p24 = por %p22, %p23
    %p25 = scmp.ne.s32.totalorder %s17, %s19
    %p26 = scmp.eq.s32.totalorder %s14, 1
    %p27 = por %p25, %p26
    %p28 = scmp.ne.s32.totalorder %s19, %s20
    %p29 = scmp.eq.s32.totalorder %s14, 0
    %p30 = por %p28, %p29
    %p31 = scmp.ne.s32.totalorder %s19, %s20
    %p32 = scmp.eq.s32.totalorder %s15, 1
    %p33 = por %p31, %p32
    %p35 = scmp.ne.s32.totalorder %s20, %s34
    %p36 = scmp.eq.s32.totalorder %s15, 0
    %p37 = por %p35, %p36
    %s39 = sadd.s32 %s38, 1
    %p42 = scmp.eq.s32.totalorder %s9, 1
    %p43 = scmp.ne.s32.totalorder %s38, %s40
    %p44 = scmp.eq.s32.totalorder %s9, 0
    %p45 = por %p43, %p44
    %p46 = scmp.ne.s32.totalorder %s38, %s40
    %p47 = scmp.eq.s32.totalorder %s14, 1
    %p48 = por %p46, %p47
    %p49 = scmp.ne.s32.totalorder %s40, %s41
    %p50 = scmp.eq.s32.totalorder %s14, 0
    %p51 = por %p49, %p50
    %p52 = scmp.ne.s32.totalorder %s40, %s41
    %p53 = scmp.eq.s32.totalorder %s15, 1
    %p54 = por %p52, %p53
    %p56 = scmp.ne.s32.totalorder %s41, %s55
    %p57 = scmp.eq.s32.totalorder %s15, 0
    %p58 = por %p56, %p57
    %s59 = ssub.s32 %s9, %s16
    %p60 = scmp.eq.s32.totalorder %s59, 0
    %s62 = sadd.s32 %s61, 1
    %s63 = scalar_select %p60, %s61, %s62
    %p66 = pneg %p60
    %p67 = scmp.eq.s32.totalorder %s9, 1
    %p68 = por %p66, %p67
    %p69 = scmp.ne.s32.totalorder %s61, %s64
    %p70 = scmp.eq.s32.totalorder %s9, 0
    %p71 = por %p69, %p70
    %p72 = scmp.ne.s32.totalorder %s61, %s64
    %p73 = scmp.eq.s32.totalorder %s14, 1
    %p74 = por %p72, %p73
    %p75 = scmp.ne.s32.totalorder %s64, %s65
    %p76 = scmp.eq.s32.totalorder %s14, 0
    %p77 = por %p75, %p76
    %p78 = scmp.ne.s32.totalorder %s64, %s65
    %p79 = scmp.eq.s32.totalorder %s15, 1
    %p80 = por %p78, %p79
    %p82 = scmp.ne.s32.totalorder %s65, %s81
    %p83 = scmp.eq.s32.totalorder %s15, 0
    %p84 = por %p82, %p83
    %s85 = ssub.s32 %s9, %s16
    %p86 = scmp.eq.s32.totalorder %s85, 0
    %s88 = sadd.s32 %s87, 1
    %s89 = scalar_select %p86, %s87, %s88
    %p92 = pneg %p86
    %p93 = scmp.eq.s32.totalorder %s9, 1
    %p94 = por %p92, %p93
    %p95 = scmp.ne.s32.totalorder %s87, %s90
    %p96 = scmp.eq.s32.totalorder %s9, 0
    %p97 = por %p95, %p96
    %p98 = scmp.ne.s32.totalorder %s87, %s90
    %p99 = scmp.eq.s32.totalorder %s14, 1
    %p100 = por %p98, %p99
    %p101 = scmp.ne.s32.totalorder %s90, %s91
    %p102 = scmp.eq.s32.totalorder %s14, 0
    %p103 = por %p101, %p102
    %p104 = scmp.ne.s32.totalorder %s90, %s91
    %p105 = scmp.eq.s32.totalorder %s15, 1
    %p106 = por %p104, %p105
    %p108 = scmp.ne.s32.totalorder %s91, %s107
    %p109 = scmp.eq.s32.totalorder %s15, 0
    %p110 = por %p108, %p109
    %p111 = scmp.le.s32.totalorder 1, %s9
    %p112 = scmp.lt.s32.totalorder %s9, 3
    %p113 = pnand %p111, %p112
    %p114 = pneg %p113
    // Predicated region
    $region9: #{gcn_layer.1} parent=5 // pred_check
      _
    $region10: #{gcn_layer.1} parent=5 // pred_check_branch
      %116 = sbr.rel (%p113) target = $region12
    $region11: #{gcn_layer.1} parent=5 // pred_region
      %s117 = ssub.s32 %s9, 1
      // Predicated region
      $region13: #{gcn_layer.1} parent=11 // pred_check
        %p118 = pneg %p30
      $region14: #{gcn_layer.1} parent=11 // pred_check_branch
        %120 = sbr.rel (%p118) target = $region16
      $region15: #{gcn_layer.1} parent=11 // pred_region
        _
      $region16: #{gcn_layer.1} parent=11 // pred_fallthru
        _
      // Predicated region
      $region17: #{gcn_layer.1} parent=11 // pred_check
        %p121 = pneg %p51
      $region18: #{gcn_layer.1} parent=11 // pred_check_branch
        %123 = sbr.rel (%p121) target = $region20
      $region19: #{gcn_layer.1} parent=11 // pred_region
        _
      $region20: #{gcn_layer.1} parent=11 // pred_fallthru
        _
    $region12: #{gcn_layer.1} parent=5 // pred_fallthru
      _
    %p124 = scmp.lt.s32.totalorder %s9, 2
    // Predicated region
    $region21: #{gcn_layer.1} parent=5 // pred_check
      %p125 = pneg %p124
    $region22: #{gcn_layer.1} parent=5 // pred_check_branch
      %127 = sbr.rel (%p125) target = $region24
    $region23: #{gcn_layer.1} parent=5 // pred_region
      // Predicated region
      $region25: #{gcn_layer.1} parent=23 // pred_check
        %p128 = pneg %p71
      $region26: #{gcn_layer.1} parent=23 // pred_check_branch
        %130 = sbr.rel (%p128) target = $region28
      $region27: #{gcn_layer.1} parent=23 // pred_region
        %p131 = scmp.lt.s32.totalorder %s9, 1
        %s132 = scalar_select %p131, %s9, 1
        %s133 = smul.addr %s132, 4
        %s134 = smul.addr %s133, 8
        %s135 = scalar_lea.vmem %s2, %s134
      $region28: #{gcn_layer.1} parent=23 // pred_fallthru
        _
    $region24: #{gcn_layer.1} parent=5 // pred_fallthru
      _
    %p136 = scmp.le.s32.totalorder 1, %s9
    %p137 = scmp.lt.s32.totalorder %s9, 3
    %p138 = pnand %p136, %p137
    %p139 = pneg %p138
    // Predicated region
    $region29: #{gcn_layer.1} parent=5 // pred_check
      _
    $region30: #{gcn_layer.1} parent=5 // pred_check_branch
      %141 = sbr.rel (%p138) target = $region32
    $region31: #{gcn_layer.1} parent=5 // pred_region
      %s142 = ssub.s32 %s9, 1
      %p143 = pneg %p30
      %p144 = pneg %p27
      %p145 = pneg %p51
      %p146 = pneg %p48
      %p147 = scmp.lt.s32.totalorder %s14, 1
      %s148 = scalar_select %p147, %s14, 1
      %s149 = smul.addr %s148, 4
      %s150 = smul.addr %s149, 8
      %s151 = scalar_lea.vmem %s2, %s150
      %p152 = pneg %p77
      %p153 = pneg %p74
      %p154 = pneg %p103
      %p155 = pneg %p100
      %p156 = scmp.lt.s32.totalorder %s14, 1
      %s157 = scalar_select %p156, %s14, 1
      %s158 = smul.addr %s157, 4
      %s159 = smul.addr %s158, 8
      %s160 = scalar_lea.vmem %s3, %s159
      %p161 = scmp.lt.s32.totalorder %s14, 1
      %s162 = scalar_select %p161, %s14, 1
      %s163 = smul.addr %s162, 4
      %s164 = smul.addr %s163, 8
      %s165 = scalar_lea.vmem %s2, %s164
      %p166 = scmp.lt.s32.totalorder %s14, 1
      %s167 = scalar_select %p166, %s14, 1
      %s168 = smul.addr %s167, 4
      %s169 = smul.addr %s168, 8
      %s170 = scalar_lea.vmem %s3, %s169
      %v171 = vld [vmem:[%s165] sm:$0xff]
      %v172 = vld [vmem:[%s165 + $0x8] sm:$0xff]
      %v173 = vld [vmem:[%s165 + $0x10] sm:$0xff]
      %v174 = vld [vmem:[%s165 + $0x18] sm:$0xff]
      %v175 = vld [vmem:[%s1] sm:$0xff]
      %v176 = vld [vmem:[%s1 + $0x8] sm:$0xff]
      %v177 = vld [vmem:[%s1 + $0x10] sm:$0xff]
      %v178 = vld [vmem:[%s1 + $0x18] sm:$0xff]
      %v179 = vld [vmem:[%s0] sm:$0xff]
      %v180 = vld [vmem:[%s0 + $0x8] sm:$0xff]
      %vm181 = vcmask 261120
      %v183 = vsel %vm181, %v175, 0
      %v186 = vsel %vm181, %v176, 0
      %v189 = vsel %vm181, %v177, 0
      %v192 = vsel %vm181, %v178, 0
      %194 = vmatpush.msra.mxu0 0.0
      %195 = vmatpush.msra.mxu0 0.0
      %196 = vmatpush.msra.mxu0 0.0
      %197 = vmatpush.msra.mxu0 0.0
      %198 = vmatpush.msra.mxu0 0.0
      %199 = vmatpush.msra.mxu0 0.0
      %200 = vmatpush.msra.mxu0 0.0
      %201 = vmatpush.msra.mxu0 0.0
      %202 = vmatpush.msra.mxu0 0.0
      %203 = vmatpush.msra.mxu0 0.0
      %204 = vmatpush.msra.mxu0 0.0
      %205 = vmatpush.msra.mxu0 0.0
      %206 = vmatpush.msra.mxu0 %v174
      %207 = vmatpush.msra.mxu0 %v173
      %208 = vmatpush.msra.mxu0 %v172
      %209 = vmatpush.msra.mxu0 %v171
      %210 = vmatmul.f32.gmra.mxu0 %v183
      %v211 = vpop.f32.mrf.mxu0
      %v212 = vadd.f32 0.0, %v211
      %213 = vmatmul.f32.gmra.mxu0 %v186
      %v214 = vpop.f32.mrf.mxu0
      %v215 = vadd.f32 0.0, %v214
      %216 = vmatmul.f32.gmra.mxu0 %v189
      %v217 = vpop.f32.mrf.mxu0
      %v218 = vadd.f32 0.0, %v217
      %219 = vmatmul.f32.gmra.mxu0 %v192
      %v220 = vpop.f32.mrf.mxu0
      %v221 = vadd.f32 0.0, %v220
      %222 = vdwg.mxu0
      %vm223 = vcmask 130048
      %v225 = vsel %vm223, %v212, 0
      %v228 = vsel %vm223, %v215, 0
      %v231 = vsel %vm223, %v218, 0
      %v234 = vsel %vm223, %v221, 0
      %236 = vmatpush.msra.mxu0 0.0
      %237 = vmatpush.msra.mxu0 0.0
      %238 = vmatpush.msra.mxu0 0.0
      %239 = vmatpush.msra.mxu0 0.0
      %240 = vmatpush.msra.mxu0 0.0
      %241 = vmatpush.msra.mxu0 0.0
      %242 = vmatpush.msra.mxu0 0.0
      %243 = vmatpush.msra.mxu0 0.0
      %244 = vmatpush.msra.mxu0 0.0
      %245 = vmatpush.msra.mxu0 0.0
      %246 = vmatpush.msra.mxu0 0.0
      %247 = vmatpush.msra.mxu0 0.0
      %248 = vmatpush.msra.mxu0 0.0
      %249 = vmatpush.msra.mxu0 0.0
      %250 = vmatpush.msra.mxu0 %v180
      %251 = vmatpush.msra.mxu0 %v179
      %252 = vmatmul.f32.gmra.mxu0 %v225
      %v253 = vpop.f32.mrf.mxu0
      %v254 = vadd.f32 0.0, %v253
      %255 = vmatmul.f32.gmra.mxu0 %v228
      %v256 = vpop.f32.mrf.mxu0
      %v257 = vadd.f32 0.0, %v256
      %258 = vmatmul.f32.gmra.mxu0 %v231
      %v259 = vpop.f32.mrf.mxu0
      %v260 = vadd.f32 0.0, %v259
      %261 = vmatmul.f32.gmra.mxu0 %v234
      %v262 = vpop.f32.mrf.mxu0
      %v263 = vadd.f32 0.0, %v262
      %264 = vdwg.mxu0
      %v265 = vadd.f32 %v254, %v171
      %v266 = vadd.f32 %v257, %v172
      %v267 = vadd.f32 %v260, %v173
      %v268 = vadd.f32 %v263, %v174
      %v269 = vmax.f32 %v265, 0.0
      %v270 = vmax.f32 %v266, 0.0
      %v271 = vmax.f32 %v267, 0.0
      %v272 = vmax.f32 %v268, 0.0
      %273 = vst.msk [vmem:[%s170] sm:$0xff] %vm223, %v269
      %274 = vst.msk [vmem:[%s170 + $0x8] sm:$0xff] %vm223, %v270
      %275 = vst.msk [vmem:[%s170 + $0x10] sm:$0xff] %vm223, %v271
      %276 = vst.msk [vmem:[%s170 + $0x18] sm:$0xff] %vm223, %v272
      %p277 = scmp.lt.s32.totalorder %s14, 1
      %s278 = scalar_select %p277, %s14, 1
      %s279 = smul.addr %s278, 4
      %s280 = smul.addr %s279, 8
      %s281 = scalar_lea.vmem %s3, %s280
      // Predicated region
      $region33: #{gcn_layer.1} parent=31 // pred_check
        %p282 = pneg %p100
      $region34: #{gcn_layer.1} parent=31 // pred_check_branch
        %284 = sbr.rel (%p282) target = $region36
      $region35: #{gcn_layer.1} parent=31 // pred_region
        _
      $region36: #{gcn_layer.1} parent=31 // pred_fallthru
        _
    $region32: #{gcn_layer.1} parent=5 // pred_fallthru
      _
    %p285 = scmp.le.s32.totalorder 2, %s9
    // Predicated region
    $region37: #{gcn_layer.1} parent=5 // pred_check
      %p286 = pneg %p285
    $region38: #{gcn_layer.1} parent=5 // pred_check_branch
      %288 = sbr.rel (%p286) target = $region40
    $region39: #{gcn_layer.1} parent=5 // pred_region
      %s289 = ssub.s32 %s9, 2
      // Predicated region
      $region41: #{gcn_layer.1} parent=39 // pred_check
        %p290 = pneg %p106
      $region42: #{gcn_layer.1} parent=39 // pred_check_branch
        %292 = sbr.rel (%p290) target = $region44
      $region43: #{gcn_layer.1} parent=39 // pred_region
        %p293 = scmp.lt.s32.totalorder %s15, 1
        %s294 = scalar_select %p293, %s15, 1
        %s295 = smul.addr %s294, 4
        %s296 = smul.addr %s295, 8
        %s297 = scalar_lea.vmem %s3, %s296
      $region44: #{gcn_layer.1} parent=39 // pred_fallthru
        _
    $region40: #{gcn_layer.1} parent=5 // pred_fallthru
      _
  $region6: #{gcn_layer.1} parent=0 // loop_footer
    %s13 = sadd.s32 1, %s9
  $region7: #{gcn_layer.1} parent=0 // loop_footer_branch
    %8 = sbr.rel target = $region3
  $region8: #{gcn_layer.1} parent=0 // loop_exit
    _

</llo_original>
